<compile_context>
chip_gen: v7x
topology: tpu7x:2x2x1
jax: 0.10.0
libtpu: 0.0.40
codegen_flags: <defaults>
</compile_context>

<pallas_src>
import jax
import jax.numpy as jnp
from jax.experimental import pallas as pl
from jax.experimental.pallas import tpu as pltpu

# Fixed luminance weights (registered buffer in the PyTorch module).
_W_R, _W_G, _W_B = 0.299, 0.587, 0.114

_LANE = 128
# Budget for B_TILE * T elements per channel per block:
#   logical input block = 3 * _MAX_BT * 4 B ~= 1.5 MiB
#   padded-in-VMEM (sublane dim 3 -> 8)    ~= 4 MiB per buffer
#   double-buffered input + output          ~= 16 MiB  (fits every generation)
_MAX_BT = 128 * 1024


def _gray_kernel(x_ref, o_ref):
    # x_ref / o_ref: VMEM f32[B_TILE, 3, T]  (T lane-dense)
    x = x_ref[...]
    l = _W_R * x[:, 0, :] + _W_G * x[:, 1, :] + _W_B * x[:, 2, :]   # (B_TILE, T)
    # Single broadcast store of the replicated gray block.
    o_ref[...] = jnp.broadcast_to(l[:, None, :], x.shape).astype(o_ref.dtype)


def _choose_tiles(N, HW):
    """Pick (B_TILE, T) so blocks are lane-dense and ~1-2 MiB of logical input."""
    if HW <= _MAX_BT:
        # Whole spatial extent in one block (full trailing dim is always legal),
        # pack several images per block to amortize per-grid-step overhead.
        T = HW
        B = max(1, min(N, _MAX_BT // max(T, 1)))
    else:
        # Tile the spatial axis; T must be a multiple of 128 when T < HW.
        T = max((_MAX_BT // _LANE) * _LANE, _LANE)
        B = 1
    return B, T


def random_color_gray(x):
    """x: (N, 3, H, W) float32. Returns (N, 3, H, W) gray-replicated output."""
    N, C, H, W = x.shape
    assert C == 3, "RandomColorGrayLayer expects 3 input channels (RGB)"
    HW = H * W
    xf = x.reshape(N, 3, HW)           # free: NCHW is contiguous
    B, T = _choose_tiles(N, HW)
    grid = (pl.cdiv(N, B), pl.cdiv(HW, T))

    out = pl.pallas_call(
        _gray_kernel,
        out_shape=jax.ShapeDtypeStruct((N, 3, HW), x.dtype),
        grid=grid,
        in_specs=[pl.BlockSpec((B, 3, T), lambda b, s: (b, 0, s))],
        out_specs=pl.BlockSpec((B, 3, T), lambda b, s: (b, 0, s)),
        compiler_params=pltpu.CompilerParams(
            dimension_semantics=("parallel", "parallel"),
            vmem_limit_bytes=32 * 1024 * 1024,
        ),
    )(xf)
    return out.reshape(N, 3, H, W)


def _reference(x):
    w = jnp.array([_W_R, _W_G, _W_B], dtype=x.dtype)
    l = jnp.sum(x * w[None, :, None, None], axis=1, keepdims=True)
    return jnp.concatenate([l, l, l], axis=1)


if __name__ == "__main__":
    key = jax.random.PRNGKey(0)
    k1, k2 = jax.random.split(key)

    # Primary deterministic test: N=2, C=3 (RGB), H=W=16.
    x = jax.random.uniform(k1, (2, 3, 16, 16), dtype=jnp.float32)
    out = jax.block_until_ready(random_color_gray(x))
    assert out.shape == (2, 3, 16, 16)
    assert jnp.allclose(out, _reference(x), atol=1e-6, rtol=1e-6)

    # Second small shape (different N / HW) to exercise the tiling wrapper.
    x2 = jax.random.uniform(k2, (3, 3, 24, 24), dtype=jnp.float32)
    out2 = jax.block_until_ready(random_color_gray(x2))
    assert out2.shape == (3, 3, 24, 24)
    assert jnp.allclose(out2, _reference(x2), atol=1e-6, rtol=1e-6)

    print("KERNEL_OK")
</pallas_src>

<mosaic_0001>
module attributes {stable_mosaic.version = 11 : i64} {
  func.func @_gray_kernel(%arg0: i32, %arg1: i32, %arg2: memref<2x3x256xf32, #tpu.memory_space<vmem>>, %arg3: memref<2x3x256xf32, #tpu.memory_space<vmem>>) attributes {dimension_semantics = [#tpu.dimension_semantics<parallel>, #tpu.dimension_semantics<parallel>], iteration_bounds = array<i64: 1, 1>, scalar_prefetch = 0 : i64, scratch_operands = 0 : i64, tpu.core_type = #tpu.core_type<tc>, window_params = [{transform_indices = @transform_0, window_bounds = array<i64: 2, 3, 256>}, {transform_indices = @transform_1, window_bounds = array<i64: 2, 3, 256>}]} {
    %c0 = arith.constant 0 : index
    %c0_0 = arith.constant 0 : index
    %c0_1 = arith.constant 0 : index
    %0 = vector.load %arg2[%c0, %c0_0, %c0_1] : memref<2x3x256xf32, #tpu.memory_space<vmem>>, vector<2x3x256xf32>
    %1 = vector.extract_strided_slice %0 {offsets = [0, 0, 0], sizes = [2, 1, 256], strides = [1, 1, 1]} : vector<2x3x256xf32> to vector<2x1x256xf32>
    %2 = vector.shape_cast %1 : vector<2x1x256xf32> to vector<2x256xf32>
    %cst = arith.constant 2.990000e-01 : f32
    %3 = vector.broadcast %cst : f32 to vector<2x256xf32>
    %4 = arith.mulf %3, %2 : vector<2x256xf32>
    %5 = vector.extract_strided_slice %0 {offsets = [0, 1, 0], sizes = [2, 1, 256], strides = [1, 1, 1]} : vector<2x3x256xf32> to vector<2x1x256xf32>
    %6 = vector.shape_cast %5 : vector<2x1x256xf32> to vector<2x256xf32>
    %cst_2 = arith.constant 5.870000e-01 : f32
    %7 = vector.broadcast %cst_2 : f32 to vector<2x256xf32>
    %8 = arith.mulf %7, %6 : vector<2x256xf32>
    %9 = arith.addf %4, %8 : vector<2x256xf32>
    %10 = vector.extract_strided_slice %0 {offsets = [0, 2, 0], sizes = [2, 1, 256], strides = [1, 1, 1]} : vector<2x3x256xf32> to vector<2x1x256xf32>
    %11 = vector.shape_cast %10 : vector<2x1x256xf32> to vector<2x256xf32>
    %cst_3 = arith.constant 1.140000e-01 : f32
    %12 = vector.broadcast %cst_3 : f32 to vector<2x256xf32>
    %13 = arith.mulf %12, %11 : vector<2x256xf32>
    %14 = arith.addf %9, %13 : vector<2x256xf32>
    %15 = vector.shape_cast %14 : vector<2x256xf32> to vector<2x1x256xf32>
    %16 = vector.shape_cast %15 : vector<2x1x256xf32> to vector<2x1x256xf32>
    %17 = vector.broadcast %16 : vector<2x1x256xf32> to vector<2x3x256xf32>
    %c0_4 = arith.constant 0 : index
    %c0_5 = arith.constant 0 : index
    %c0_6 = arith.constant 0 : index
    %18 = vector.load %arg3[%c0_4, %c0_5, %c0_6] : memref<2x3x256xf32, #tpu.memory_space<vmem>>, vector<2x3x256xf32>
    tpu.vector_store %arg3[%c0_4, %c0_5, %c0_6], %17 {strides = array<i32>} : memref<2x3x256xf32, #tpu.memory_space<vmem>>, vector<2x3x256xf32>,
    return
  }
  func.func @transform_0(%arg0: i32, %arg1: i32) -> (i32, i32, i32) {
    %c0_i32 = arith.constant 0 : i32
    %c0_i32_0 = arith.constant 0 : i32
    return %arg0, %c0_i32, %arg1 : i32, i32, i32
  }
  func.func @transform_1(%arg0: i32, %arg1: i32) -> (i32, i32, i32) {
    %c0_i32 = arith.constant 0 : i32
    %c0_i32_0 = arith.constant 0 : i32
    return %arg0, %c0_i32, %arg1 : i32, i32, i32
  }
}

</mosaic_0001>

<llo_original>
// kernel: tpu_custom_call.1
$region0: #{tpu_custom_call.1}
  #allocation0 [shape = 'u32[]', space=smem, size = 0x4, offset = 0x4, fixed_abs, tag = 'smem constant byte address 0x4 - core index']
  #allocation1 [shape = 'u32[144,128]{1,0:T(1,128)}', space=vmem, size = 0x12000, scoped, tag = 'internal scratch']
  %s0 = inlined_call_operand.vmem [shape: f32[2,3,256], index: 0, kind: input, shape index: {}]
  %s1 = inlined_call_operand.vmem [shape: f32[2,3,256], index: 1, kind: output, shape index: {}]
  %s2 = sld [smem:[#allocation0]]
  $region14: #{tpu_custom_call.1} parent=0
    _
  %s4 = ssub.s32 1, %s2
  %s5 = scalar_select 0, %s4, %s2
  // Predicated region
  $region2: #{tpu_custom_call.1} parent=0 // pred_check
    _
  $region3: #{tpu_custom_call.1} parent=0 // pred_check_branch
    %7 = sbr.rel (0) target = $region5
  $region4: #{tpu_custom_call.1} parent=0 // pred_region
    _
  $region5: #{tpu_custom_call.1} parent=0 // pred_fallthru
    _
  %v8 = vld [vmem:[%s0] sm:$0x77]
  %v9 = vld [vmem:[%s0 + $0x8] sm:$0x77]
  %v10 = vmul.f32 %v8, 0.299
  %v11 = vmul.f32 %v9, 0.299
  %v12 = vmul.f32 %v8, 0.587
  %v13 = vmul.f32 %v9, 0.587
  %v16 = vrot.slane %v12, 5
  %v17 = vrot.slane %v16, 4
  %v18 = vrot.slane %v13, 5
  %v19 = vrot.slane %v18, 4
  %v22 = vadd.f32 %v10, %v17
  %v23 = vadd.f32 %v11, %v19
  %v24 = vmul.f32 %v8, 0.114
  %v25 = vmul.f32 %v9, 0.114
  %v28 = vrot.slane %v24, 6
  %v29 = vrot.slane %v28, 4
  %v30 = vrot.slane %v25, 6
  %v31 = vrot.slane %v30, 4
  %v34 = vadd.f32 %v22, %v29
  %v35 = vadd.f32 %v23, %v31
  %v38 = vlaneseq
  %v39 = vshrl.u32 %v38, 7
  %v40 = vsub.s32 0, %v39
  %v41 = vrot.slane %v34, %v40
  %v42 = vlaneseq
  %v43 = vshrl.u32 %v42, 7
  %v44 = vsub.s32 4, %v43
  %v45 = vrot.slane %v34, %v44
  %v46 = vlaneseq
  %v47 = vshrl.u32 %v46, 7
  %v48 = vsub.s32 0, %v47
  %v49 = vrot.slane %v35, %v48
  %v50 = vlaneseq
  %v51 = vshrl.u32 %v50, 7
  %v52 = vsub.s32 4, %v51
  %v53 = vrot.slane %v35, %v52
  %v58 = vlaneseq
  %v59 = vshrl.u32 %v58, 7
  %v60 = vsub.s32 0, %v59
  %v61 = vrot.slane %v41, %v60
  %v62 = vlaneseq
  %v63 = vshrl.u32 %v62, 7
  %v64 = vsub.s32 0, %v63
  %v65 = vrot.slane %v45, %v64
  %v66 = vlaneseq
  %v67 = vshrl.u32 %v66, 7
  %v68 = vsub.s32 0, %v67
  %v69 = vrot.slane %v49, %v68
  %v70 = vlaneseq
  %v71 = vshrl.u32 %v70, 7
  %v72 = vsub.s32 0, %v71
  %v73 = vrot.slane %v53, %v72
  %v78 = vcombine.low %v61, %v65
  %v79 = vcombine.low %v69, %v73
  %82 = vst [vmem:[%s1] sm:$0x77] %v78
  %83 = vst [vmem:[%s1 + $0x8] sm:$0x77] %v79
  // Predicated region
  $region6: #{tpu_custom_call.1} parent=0 // pred_check
    _
  $region7: #{tpu_custom_call.1} parent=0 // pred_check_branch
    %85 = sbr.rel (0) target = $region9
  $region8: #{tpu_custom_call.1} parent=0 // pred_region
    _
  $region9: #{tpu_custom_call.1} parent=0 // pred_fallthru
    _
  // Predicated region
  $region10: #{tpu_custom_call.1} parent=0 // pred_check
    _
  $region11: #{tpu_custom_call.1} parent=0 // pred_check_branch
    %87 = sbr.rel (0) target = $region13
  $region12: #{tpu_custom_call.1} parent=0 // pred_region
    _
  $region13: #{tpu_custom_call.1} parent=0 // pred_fallthru
    _

</llo_original>
